<compile_context>
chip_gen: v7x
topology: tpu7x:2x2x1
jax: 0.10.0
libtpu: 0.0.40
codegen_flags: <defaults>
</compile_context>

<pallas_src>
import jax
import jax.numpy as jnp
from jax.experimental import pallas as pl
from jax.experimental.pallas import tpu as pltpu

EPS = 1e-12

# Lane-dense candidate widths for the flattened 2-D slab (multiples of 128).
_COL_CANDIDATES = (4096, 2048, 1024, 512, 256, 128)

# Below this element count, fused XLA beats kernel launch + layout plumbing.
_DEFAULT_MIN_PALLAS_ELEMS = 64 * 1024


def _round_up(x, m):
    return ((x + m - 1) // m) * m


def _tpu_generation():
    """Best-effort TPU generation tag: 'v7', 'v6', or None (conservative)."""
    try:
        kind = jax.devices()[0].device_kind.lower()
    except Exception:
        return None
    if "v7" in kind or "7x" in kind:
        return "v7"
    if "v6" in kind or "6e" in kind:
        return "v6"
    return None


def _vmem_capacity_bytes():
    try:
        return int(pltpu.get_tpu_info().vmem_capacity_bytes)
    except Exception:
        return None


def _hw_config():
    """Generation-aware block size / VMEM limit / megacore grid settings."""
    gen = _tpu_generation()
    if gen == "v7":
        # 64 MiB VMEM, 3.2 TB/s HBM, 2 TensorCores: bigger blocks amortize the
        # ~0.35us/step pipeline overhead; the explicit vmem_limit_bytes lifts
        # the 32 MiB default scoped limit; even >=2-step grids balance the TCs.
        cfg = dict(block_bytes=4 * 1024 * 1024,
                   vmem_limit_bytes=48 * 1024 * 1024,
                   min_split_bytes=512 * 1024,
                   want_even_grid=True,
                   native_bf16=True)
    elif gen == "v6":
        # 1.4 TB/s HBM: 2 MiB blocks already sit ~85% of roofline.
        cfg = dict(block_bytes=2 * 1024 * 1024,
                   vmem_limit_bytes=32 * 1024 * 1024,
                   min_split_bytes=2 * 1024 * 1024,
                   want_even_grid=False,
                   native_bf16=True)
    else:
        # v5e / unknown: stay under the 16 MiB default scoped-VMEM limit and
        # keep f32 compute (no bf16 VPU/EUP on v5e).
        cfg = dict(block_bytes=2 * 1024 * 1024,
                   vmem_limit_bytes=None,
                   min_split_bytes=2 * 1024 * 1024,
                   want_even_grid=False,
                   native_bf16=False)
    cap = _vmem_capacity_bytes()
    if cap is not None and cfg["vmem_limit_bytes"] is not None:
        cfg["vmem_limit_bytes"] = min(cfg["vmem_limit_bytes"], cap)
    return cfg


def _make_exp_kernel(compute_dtype):
    def _kernel(x_ref, o_ref):
        x = x_ref[...]
        if x.dtype != compute_dtype:
            x = x.astype(compute_dtype)          # f32 upcast only where needed
        y = jnp.exp(x) + jnp.asarray(EPS, dtype=compute_dtype)
        o_ref[...] = y.astype(o_ref.dtype)
    return _kernel


def _exp_xla(x, compute_dtype, out_dtype):
    y = jnp.exp(x.astype(compute_dtype)) + jnp.asarray(EPS, dtype=compute_dtype)
    return y.astype(out_dtype)


def _choose_tile_rows(rows, cols, itemsize, block_bytes, min_split_bytes,
                      want_even_grid):
    """Pick a tile height (multiple of 8, or == rows for a single block)."""
    total_bytes = rows * cols * itemsize
    if total_bytes <= min_split_bytes or rows <= 8:
        return rows  # single block; block shape == array shape is legal
    bytes_per_row = cols * itemsize
    tile_rows = max(8, (block_bytes // bytes_per_row) // 8 * 8)
    if tile_rows >= rows:
        # Force >= 2 grid steps so megacore can shard the work.
        tile_rows = max(8, _round_up(pl.cdiv(rows, 2), 8))
        if tile_rows >= rows:
            return rows
    if want_even_grid:
        # Shrink the tile until the grid count is even (balanced TC split).
        t = tile_rows
        while t > 8 and pl.cdiv(rows, t) % 2 == 1:
            t -= 8
        if pl.cdiv(rows, t) % 2 == 0:
            tile_rows = t
    return tile_rows


def _exp_pallas_2d(x2d, tile_rows, out_dtype, compute_dtype, vmem_limit_bytes):
    rows, cols = x2d.shape
    n = rows * cols
    in_b = jnp.dtype(x2d.dtype).itemsize
    out_b = jnp.dtype(out_dtype).itemsize
    cp_kwargs = dict(dimension_semantics=("parallel",))
    if vmem_limit_bytes is not None:
        cp_kwargs["vmem_limit_bytes"] = int(vmem_limit_bytes)
    return pl.pallas_call(
        _make_exp_kernel(compute_dtype),
        out_shape=jax.ShapeDtypeStruct((rows, cols), out_dtype),
        grid=(pl.cdiv(rows, tile_rows),),
        in_specs=[pl.BlockSpec((tile_rows, cols), lambda i: (i, 0))],
        out_specs=pl.BlockSpec((tile_rows, cols), lambda i: (i, 0)),
        compiler_params=pltpu.CompilerParams(**cp_kwargs),
        cost_estimate=pl.CostEstimate(
            flops=n, transcendentals=n, bytes_accessed=n * (in_b + out_b)),
    )(x2d)


def exp_module(x, *, min_pallas_elems=None, block_bytes=None):
    """Equivalent of Exp().forward(x): exp(x) + 1e-12, elementwise."""
    x = jnp.asarray(x)
    orig_shape = x.shape
    out_dtype = x.dtype
    if not jnp.issubdtype(x.dtype, jnp.floating):
        # torch.exp promotes integral inputs to floating point.
        x = x.astype(jnp.float32)
        out_dtype = jnp.float32

    cfg = _hw_config()
    if min_pallas_elems is None:
        min_pallas_elems = _DEFAULT_MIN_PALLAS_ELEMS
    if block_bytes is None:
        block_bytes = cfg["block_bytes"]
    compute_dtype = (x.dtype
                     if (cfg["native_bf16"] and x.dtype == jnp.bfloat16)
                     else jnp.float32)

    n = x.size
    if n == 0 or n < min_pallas_elems:
        return _exp_xla(x, compute_dtype, out_dtype).reshape(orig_shape)

    itemsize = jnp.dtype(x.dtype).itemsize
    flat = x.reshape(-1)                       # metadata-only for contiguous x
    n_main = (n // 128) * 128                  # 128-aligned, lane-dense prefix
    tail = n - n_main
    if n_main == 0:
        return _exp_xla(x, compute_dtype, out_dtype).reshape(orig_shape)

    # Widest lane-dense column count dividing the prefix -> copy-free reshape.
    cols = 128
    for c in _COL_CANDIDATES:
        if n_main % c == 0:
            cols = c
            break
    rows = n_main // cols
    main = flat if tail == 0 else flat[:n_main]
    x2d = main.reshape(rows, cols)

    tile_rows = _choose_tile_rows(rows, cols, itemsize, block_bytes,
                                  min(cfg["min_split_bytes"], block_bytes),
                                  cfg["want_even_grid"])
    out2d = _exp_pallas_2d(x2d, tile_rows, out_dtype, compute_dtype,
                           cfg["vmem_limit_bytes"])

    if tail == 0:
        return out2d.reshape(orig_shape)
    # Ragged tail (< 128 elems): cheap XLA exp, single concat instead of the
    # old pad-and-slice double HBM pass.
    out_tail = _exp_xla(flat[n_main:], compute_dtype, out_dtype)
    return jnp.concatenate([out2d.reshape(-1), out_tail]).reshape(orig_shape)


if __name__ == "__main__":
    key = jax.random.PRNGKey(0)
    k1, k2, k3, k4, k5 = jax.random.split(key, 5)

    # 1) Small NCHW input matching the module spec; force the Pallas path.
    x1 = jax.random.normal(k1, (2, 4, 16, 16), dtype=jnp.float32)
    y1 = exp_module(x1, min_pallas_elems=0)
    jax.block_until_ready(y1)
    ref1 = jnp.exp(x1) + EPS
    assert y1.shape == x1.shape and y1.dtype == x1.dtype
    assert jnp.allclose(y1, ref1, rtol=1e-6, atol=1e-6)

    # 2) Multi-block grid with a partial (masked) tail block.
    x2 = jax.random.normal(k2, (1, 3, 125, 1024), dtype=jnp.float32)
    y2 = exp_module(x2, min_pallas_elems=0, block_bytes=256 * 1024)
    jax.block_until_ready(y2)
    ref2 = jnp.exp(x2) + EPS
    assert jnp.allclose(y2, ref2, rtol=1e-6, atol=1e-6)

    # 3) Element count not divisible by 128 -> Pallas prefix + XLA tail split.
    x3 = jax.random.normal(k3, (3, 5, 7, 11), dtype=jnp.float32)
    y3 = exp_module(x3, min_pallas_elems=0)
    jax.block_until_ready(y3)
    ref3 = jnp.exp(x3) + EPS
    assert y3.shape == x3.shape
    assert jnp.allclose(y3, ref3, rtol=1e-6, atol=1e-6)

    # 4) bf16 input (native bf16 compute on v6e/v7x, f32 upcast elsewhere).
    x4 = jax.random.normal(k4, (4, 4, 32, 32), dtype=jnp.bfloat16)
    y4 = exp_module(x4, min_pallas_elems=0)
    jax.block_until_ready(y4)
    ref4 = jnp.exp(x4.astype(jnp.float32)) + EPS
    assert y4.dtype == jnp.bfloat16 and y4.shape == x4.shape
    assert jnp.allclose(y4.astype(jnp.float32), ref4, rtol=5e-2, atol=1e-3)

    # 5) Integer input: promoted to float32 (torch.exp promotion semantics).
    x5 = jax.random.randint(k5, (8, 256), -3, 4, dtype=jnp.int32)
    y5 = exp_module(x5, min_pallas_elems=0)
    jax.block_until_ready(y5)
    ref5 = jnp.exp(x5.astype(jnp.float32)) + EPS
    assert y5.dtype == jnp.float32
    assert jnp.allclose(y5, ref5, rtol=1e-6, atol=1e-6)

    print("KERNEL_OK")
</pallas_src>

<mosaic_0001>
module attributes {stable_mosaic.version = 11 : i64} {
  func.func @_kernel(%arg0: i32, %arg1: memref<1x2048xf32, #tpu.memory_space<vmem>>, %arg2: memref<1x2048xf32, #tpu.memory_space<vmem>>) attributes {dimension_semantics = [#tpu.dimension_semantics<parallel>], iteration_bounds = array<i64: 1>, scalar_prefetch = 0 : i64, scratch_operands = 0 : i64, tpu.core_type = #tpu.core_type<tc>, window_params = [{transform_indices = @transform_0, window_bounds = array<i64: 1, 2048>}, {transform_indices = @transform_1, window_bounds = array<i64: 1, 2048>}]} {
    %c0 = arith.constant 0 : index
    %c0_0 = arith.constant 0 : index
    %0 = vector.load %arg1[%c0, %c0_0] : memref<1x2048xf32, #tpu.memory_space<vmem>>, vector<1x2048xf32>
    %1 = math.exp %0 : vector<1x2048xf32>
    %cst = arith.constant 9.99999996E-13 : f32
    %2 = vector.broadcast %cst : f32 to vector<1x2048xf32>
    %3 = arith.addf %1, %2 : vector<1x2048xf32>
    %c0_1 = arith.constant 0 : index
    %c0_2 = arith.constant 0 : index
    %4 = vector.load %arg2[%c0_1, %c0_2] : memref<1x2048xf32, #tpu.memory_space<vmem>>, vector<1x2048xf32>
    tpu.vector_store %arg2[%c0_1, %c0_2], %3 {strides = array<i32>} : memref<1x2048xf32, #tpu.memory_space<vmem>>, vector<1x2048xf32>,
    return
  }
  func.func @transform_0(%arg0: i32) -> (i32, i32) {
    %c0_i32 = arith.constant 0 : i32
    %c0_i32_0 = arith.constant 0 : i32
    return %arg0, %c0_i32 : i32, i32
  }
  func.func @transform_1(%arg0: i32) -> (i32, i32) {
    %c0_i32 = arith.constant 0 : i32
    %c0_i32_0 = arith.constant 0 : i32
    return %arg0, %c0_i32 : i32, i32
  }
}

</mosaic_0001>

<llo_original>
// kernel: tpu_custom_call.1
$region0: #{tpu_custom_call.1}
  #allocation0 [shape = 'u32[]', space=smem, size = 0x4, offset = 0x4, fixed_abs, tag = 'smem constant byte address 0x4 - core index']
  #allocation1 [shape = 'u32[144,128]{1,0:T(1,128)}', space=vmem, size = 0x12000, scoped, tag = 'internal scratch']
  %s0 = inlined_call_operand.hbm [shape: f32[1,2048], index: 0, kind: input, shape index: {}]
  %s1 = inlined_call_operand.hbm [shape: f32[1,2048], index: 1, kind: output, shape index: {}]
  %s2 = sld [smem:[#allocation0]]
  $region18: #{tpu_custom_call.1} parent=0
    _
  %s4 = ssub.s32 1, %s2
  %s5 = scalar_select 0, %s4, %s2
  $region1: #{tpu_custom_call.1} parent=0
    #allocation2 [shape = 'u8[8192]{0}', space=vmem, size = 0x2000, scoped, tag = 'input window, operand 0, single buffered']
    #allocation3 [shape = 's32[1]{0}', space=sflag, size = 0x4, scoped, tag = 'scoped memory for tpu_custom_call.1']
    #allocation4 [shape = 's32[1]{0}', space=sflag, size = 0x4, scoped, tag = 'scoped memory for tpu_custom_call.1']
    #allocation5 [shape = 'u8[8192]{0}', space=vmem, size = 0x2000, scoped, tag = 'output window, operand 0, single buffered']
    %6 = vsyncpa [#allocation3], 0
    %7 = vsyncpa [#allocation4], 0
    // Predicated region
    $region2: #{tpu_custom_call.1} parent=1 // pred_check
      _
    $region3: #{tpu_custom_call.1} parent=1 // pred_check_branch
      %9 = sbr.rel (0) target = $region5
    $region4: #{tpu_custom_call.1} parent=1 // pred_region
      %s11 = ssub.s32 256, 256
      %12 = vsyncadd [#allocation3], %s11
      %s14 = sshll.u32 [#allocation2], 4
      %s15 = int_to_ptr.vmem [resolvable:$true] %s14
      %17 = dma.hbm_to_vmem [thread:$0]  %s0, 256, %s15, [#allocation3]
    $region5: #{tpu_custom_call.1} parent=1 // pred_fallthru
      _
    // Predicated region
    $region6: #{tpu_custom_call.1} parent=1 // pred_check
      _
    $region7: #{tpu_custom_call.1} parent=1 // pred_check_branch
      %19 = sbr.rel (0) target = $region9
    $region8: #{tpu_custom_call.1} parent=1 // pred_region
      %20 = dma.done [#allocation3], 256
    $region9: #{tpu_custom_call.1} parent=1 // pred_fallthru
      _
    %v21 = vld [vmem:[#allocation2] sm:$0xff]
    %v22 = vld [vmem:[#allocation2 + $0x8] sm:$0xff]
    %v23 = vmul.f32 %v21, 1.442695
    %v24 = vpow.pop %v23
    %v25 = vmul.f32 %v22, 1.442695
    %v26 = vpow.pop %v25
    %v27 = vadd.f32 %v24, 1e-12
    %v28 = vadd.f32 %v26, 1e-12
    %29 = vst [vmem:[#allocation5] sm:$0xff] %v27
    %30 = vst [vmem:[#allocation5 + $0x8] sm:$0xff] %v28
    // Predicated region
    $region10: #{tpu_custom_call.1} parent=1 // pred_check
      _
    $region11: #{tpu_custom_call.1} parent=1 // pred_check_branch
      %32 = sbr.rel (0) target = $region13
    $region12: #{tpu_custom_call.1} parent=1 // pred_region
      %s34 = ssub.s32 256, 256
      %35 = vsyncadd [#allocation4], %s34
      %s37 = sshll.u32 [#allocation5], 4
      %s38 = int_to_ptr.vmem [resolvable:$true] %s37
      %40 = dma.vmem_to_hbm [thread:$0]  %s38, 256, %s1, [#allocation4]
    $region13: #{tpu_custom_call.1} parent=1 // pred_fallthru
      _
    // Predicated region
    $region14: #{tpu_custom_call.1} parent=1 // pred_check
      _
    $region15: #{tpu_custom_call.1} parent=1 // pred_check_branch
      %42 = sbr.rel (0) target = $region17
    $region16: #{tpu_custom_call.1} parent=1 // pred_region
      %43 = dma.done [#allocation4], 256
    $region17: #{tpu_custom_call.1} parent=1 // pred_fallthru
      _
    %44 = vsyncpa [#allocation3], 1
    %45 = vsyncpa [#allocation4], 1

</llo_original>
